<compile_context>
chip_gen: v5e
topology: v5e:2x2
jax: 0.10.0
libtpu: 0.0.40
codegen_flags: <defaults>
</compile_context>

<pallas_src>
import functools

import jax
import jax.numpy as jnp
from jax.experimental import pallas as pl
from jax.experimental.pallas import tpu as pltpu


def _dgcnn_kernel(lens_ref, x_ref, w_ref, b_ref, gamma_ref, beta_ref, o_ref,
                  xbuf_ref, *, k_size, dilation, pad, eps):
    """One block of BB batch elements per grid step.

    lens_ref : SMEM (B,) int32          valid sequence length per batch element
    x_ref    : (BB, L, C_in)  bf16      input tile (also the residual)
    w_ref    : (k*C_in, 2*C_out) bf16   fused conv weight
    b_ref    : (1, 2*C_out) f32         conv bias
    gamma_ref: (1, C_in) f32            LayerNorm weight
    beta_ref : (1, C_in) f32            LayerNorm bias
    o_ref    : (BB, L, C_out) f32       output (C_out == C_in for the residual)
    xbuf_ref : VMEM (BB, L + 2*pad, C_in) f32 scratch (zero-padded conv halo)
    """
    bb, seq_len, c_in = x_ref.shape
    two_cout = w_ref.shape[1]
    c_out = two_cout // 2
    g = pl.program_id(0)

    # ---- stage the tile into a per-sequence zero-padded scratch (conv halo) ----
    if pad > 0:
        halo = jnp.zeros((bb, pad, c_in), xbuf_ref.dtype)
        xbuf_ref[:, pl.ds(0, pad), :] = halo
        xbuf_ref[:, pl.ds(pad + seq_len, pad), :] = halo
    xbuf_ref[:, pl.ds(pad, seq_len), :] = x_ref[...].astype(xbuf_ref.dtype)

    # ---- fused k-tap dilated conv: one big MXU matmul, K = k*C_in ----
    taps = [xbuf_ref[:, pl.ds(t * dilation, seq_len), :] for t in range(k_size)]
    lhs = jnp.concatenate(taps, axis=-1).astype(jnp.bfloat16)      # (bb, L, k*C_in)
    lhs = lhs.reshape(bb * seq_len, k_size * c_in)                 # free: L % 8 == 0
    acc = jnp.dot(lhs, w_ref[...], preferred_element_type=jnp.float32)
    acc = acc + b_ref[...].astype(jnp.float32)                     # (bb*L, 2*C_out)
    acc = acc.reshape(bb, seq_len, two_cout)

    # ---- GLU over the channel dim: a * sigmoid(b) ----
    glu = acc[..., :c_out] * jax.nn.sigmoid(acc[..., c_out:])      # (bb, L, C_out) f32

    # Dropout is identity in eval mode.
    # TODO(synk): training-mode dropout (stateful PRNG mask) not implemented.

    # ---- prefix padding mask rebuilt in-kernel from scalar-prefetched lengths ----
    l_idx = jax.lax.broadcasted_iota(jnp.int32, (1, seq_len, c_out), 1)
    mask = jnp.concatenate(
        [(l_idx < lens_ref[g * bb + i]).astype(jnp.float32) for i in range(bb)],
        axis=0)                                                    # (bb, L, C_out)
    glu = glu * mask

    # ---- residual + LayerNorm over channels (f32) ----
    y = glu + x_ref[...].astype(jnp.float32)                       # (bb, L, C)
    mu = jnp.mean(y, axis=-1, keepdims=True)
    var = jnp.mean(jnp.square(y - mu), axis=-1, keepdims=True)     # biased, as torch
    yn = (y - mu) * jax.lax.rsqrt(var + eps)
    gamma = gamma_ref[...].reshape(1, 1, c_in)
    beta = beta_ref[...].reshape(1, 1, c_in)
    o_ref[...] = (yn * gamma + beta).astype(o_ref.dtype)


def _pick_block_batch(batch, seq_len, target_rows=512):
    """Largest divisor of `batch` keeping BB*L <= target_rows (fills the MXU M dim)."""
    bb = 1
    for d in range(1, batch + 1):
        if batch % d == 0 and d * seq_len <= target_rows:
            bb = d
    return bb


def dgcnn_layer(x, lengths, w, b, gamma, beta, *, k_size=3, dilation=1,
                eps=1e-5, block_batch=None):
    """x: [B, L, C_in], lengths: [B] int (prefix padding mask), w: [k, C_in, 2*C_out]."""
    B, L, C_in = x.shape
    k, w_cin, two_cout = w.shape
    c_out = two_cout // 2
    assert k == k_size and w_cin == C_in
    assert c_out == C_in, "residual x + x_r requires out_channels == in_channels"
    assert k_size % 2 == 1, "'same'-length conv output requires odd k_size"
    pad = dilation * (k_size - 1) // 2
    Lp = L + 2 * pad

    BB = _pick_block_batch(B, L) if block_batch is None else block_batch
    assert B % BB == 0

    # bf16 on the two big HBM streams (x, w); everything elementwise stays f32.
    x_bf = x.astype(jnp.bfloat16)
    w2 = w.reshape(k_size * C_in, two_cout).astype(jnp.bfloat16)   # fused-tap weight
    b2 = b.reshape(1, two_cout).astype(jnp.float32)
    gamma2 = gamma.reshape(1, C_in).astype(jnp.float32)
    beta2 = beta.reshape(1, C_in).astype(jnp.float32)
    lens_i32 = lengths.astype(jnp.int32)

    kernel = functools.partial(_dgcnn_kernel, k_size=k_size, dilation=dilation,
                               pad=pad, eps=eps)

    flops = 2 * B * L * (k_size * C_in) * two_cout
    bytes_accessed = (x_bf.size * 2 + w2.size * 2 + B * L * C_in * 4
                      + (b2.size + gamma2.size + beta2.size) * 4 + lens_i32.size * 4)

    return pl.pallas_call(
        kernel,
        out_shape=jax.ShapeDtypeStruct((B, L, C_in), jnp.float32),
        grid_spec=pltpu.PrefetchScalarGridSpec(
            num_scalar_prefetch=1,                                  # lengths -> SMEM
            grid=(B // BB,),
            in_specs=[
                pl.BlockSpec((BB, L, C_in), lambda g, lens: (g, 0, 0)),          # x
                pl.BlockSpec((k_size * C_in, two_cout), lambda g, lens: (0, 0)),  # w
                pl.BlockSpec((1, two_cout), lambda g, lens: (0, 0)),              # b
                pl.BlockSpec((1, C_in), lambda g, lens: (0, 0)),                  # gamma
                pl.BlockSpec((1, C_in), lambda g, lens: (0, 0)),                  # beta
            ],
            out_specs=pl.BlockSpec((BB, L, C_in), lambda g, lens: (g, 0, 0)),
            scratch_shapes=[pltpu.VMEM((BB, Lp, C_in), jnp.float32)],
        ),
        compiler_params=pltpu.CompilerParams(
            dimension_semantics=("parallel",)),
        cost_estimate=pl.CostEstimate(flops=flops,
                                      transcendentals=B * L * c_out,
                                      bytes_accessed=bytes_accessed),
    )(lens_i32, x_bf, w2, b2, gamma2, beta2)


def dgcnn_layer_ref(x, mask, w, b, gamma, beta, *, k_size=3, dilation=1, eps=1e-5):
    """Pure-JAX reference (same math as the PyTorch module in eval mode)."""
    B, L, C_in = x.shape
    k, _, two_cout = w.shape
    c_out = two_cout // 2
    pad = dilation * (k_size - 1) // 2
    xpad = jnp.pad(x, ((0, 0), (pad, pad), (0, 0)))
    conv = jnp.zeros((B, L, two_cout), jnp.float32)
    for t in range(k_size):
        conv += jnp.einsum("blc,co->blo",
                           xpad[:, t * dilation:t * dilation + L, :], w[t])
    conv += b[None, None, :]
    glu = conv[..., :c_out] * jax.nn.sigmoid(conv[..., c_out:])
    y = glu * mask.astype(jnp.float32)[:, :, None] + x
    mu = jnp.mean(y, axis=-1, keepdims=True)
    var = jnp.mean(jnp.square(y - mu), axis=-1, keepdims=True)
    return (y - mu) * jax.lax.rsqrt(var + eps) * gamma + beta


if __name__ == "__main__":
    # Small, DGCNN-consistent shapes: batch=2, seq=16, channels=32 (= hid_dim).
    B, L, C = 2, 16, 32
    K_SIZE, DILATION = 3, 1

    key = jax.random.PRNGKey(0)
    kx, kw, kb = jax.random.split(key, 3)

    x = jax.random.normal(kx, (B, L, C), dtype=jnp.float32)
    # Padding-style mask: first 12 / 9 tokens valid for the two batch elements.
    lengths = jnp.array([12, 9], dtype=jnp.int32)
    mask = (jnp.arange(L)[None, :] < lengths[:, None]).astype(jnp.float32)

    # Deterministic parameter init (Conv1d-like fan_in scaling; LN gamma=1, beta=0).
    fan_in = C * K_SIZE
    bound = 1.0 / jnp.sqrt(fan_in)
    w = jax.random.uniform(kw, (K_SIZE, C, 2 * C), jnp.float32, -bound, bound)
    b = jax.random.uniform(kb, (2 * C,), jnp.float32, -bound, bound)
    gamma = jnp.ones((C,), jnp.float32)
    beta = jnp.zeros((C,), jnp.float32)

    out = dgcnn_layer(x, lengths, w, b, gamma, beta,
                      k_size=K_SIZE, dilation=DILATION)
    out = jax.block_until_ready(out)

    # Reference on the same bf16-rounded values the kernel feeds the MXU
    # (the bf16 cast is the only intentional precision difference vs. pure f32).
    x_r = x.astype(jnp.bfloat16).astype(jnp.float32)
    w_r = w.astype(jnp.bfloat16).astype(jnp.float32)
    ref = dgcnn_layer_ref(x_r, mask, w_r, b, gamma, beta,
                          k_size=K_SIZE, dilation=DILATION)

    assert out.shape == (B, L, C)
    assert jnp.allclose(out, ref, atol=1e-3, rtol=1e-3), "mismatch vs reference"

    print("KERNEL_OK")
</pallas_src>

<mosaic_0001>
module attributes {stable_mosaic.version = 11 : i64} {
  func.func @_dgcnn_kernel(%arg0: i32, %arg1: memref<2xi32, #tpu.memory_space<smem>>, %arg2: memref<2x16x32xbf16, #tpu.memory_space<vmem>>, %arg3: memref<96x64xbf16, #tpu.memory_space<vmem>>, %arg4: memref<1x64xf32, #tpu.memory_space<vmem>>, %arg5: memref<1x32xf32, #tpu.memory_space<vmem>>, %arg6: memref<1x32xf32, #tpu.memory_space<vmem>>, %arg7: memref<2x16x32xf32, #tpu.memory_space<vmem>>, %arg8: memref<2x18x32xf32, #tpu.memory_space<vmem>>) attributes {dimension_semantics = [#tpu.dimension_semantics<parallel>], iteration_bounds = array<i64: 1>, scalar_prefetch = 1 : i64, scratch_operands = 1 : i64, tpu.core_type = #tpu.core_type<tc>, window_params = [{transform_indices = @transform_0, window_bounds = array<i64: 2, 16, 32>}, {pipeline_mode = #tpu.pipeline_mode<synchronous>, transform_indices = @transform_1, window_bounds = array<i64: 96, 64>}, {pipeline_mode = #tpu.pipeline_mode<synchronous>, transform_indices = @transform_2, window_bounds = array<i64: 1, 64>}, {pipeline_mode = #tpu.pipeline_mode<synchronous>, transform_indices = @transform_3, window_bounds = array<i64: 1, 32>}, {pipeline_mode = #tpu.pipeline_mode<synchronous>, transform_indices = @transform_4, window_bounds = array<i64: 1, 32>}, {transform_indices = @transform_5, window_bounds = array<i64: 2, 16, 32>}]} {
    %cst = arith.constant 0.000000e+00 : f32
    %0 = vector.broadcast %cst : f32 to vector<2x1x32xf32>
    %c0 = arith.constant 0 : index
    %c0_0 = arith.constant 0 : index
    %c0_1 = arith.constant 0 : index
    %1 = vector.load %arg8[%c0, %c0_0, %c0_1] : memref<2x18x32xf32, #tpu.memory_space<vmem>>, vector<2x1x32xf32>
    tpu.vector_store %arg8[%c0, %c0_0, %c0_1], %0 {strides = array<i32>} : memref<2x18x32xf32, #tpu.memory_space<vmem>>, vector<2x1x32xf32>,
    %c0_2 = arith.constant 0 : index
    %c17 = arith.constant 17 : index
    %c0_3 = arith.constant 0 : index
    %2 = vector.load %arg8[%c0_2, %c17, %c0_3] : memref<2x18x32xf32, #tpu.memory_space<vmem>>, vector<2x1x32xf32>
    tpu.vector_store %arg8[%c0_2, %c17, %c0_3], %0 {strides = array<i32>} : memref<2x18x32xf32, #tpu.memory_space<vmem>>, vector<2x1x32xf32>,
    %c0_4 = arith.constant 0 : index
    %c0_5 = arith.constant 0 : index
    %c0_6 = arith.constant 0 : index
    %3 = vector.load %arg2[%c0_4, %c0_5, %c0_6] : memref<2x16x32xbf16, #tpu.memory_space<vmem>>, vector<2x16x32xbf16>
    %4 = arith.extf %3 : vector<2x16x32xbf16> to vector<2x16x32xf32>
    %c0_7 = arith.constant 0 : index
    %c1 = arith.constant 1 : index
    %c0_8 = arith.constant 0 : index
    %5 = vector.load %arg8[%c0_7, %c1, %c0_8] : memref<2x18x32xf32, #tpu.memory_space<vmem>>, vector<2x16x32xf32>
    tpu.vector_store %arg8[%c0_7, %c1, %c0_8], %4 {strides = array<i32>} : memref<2x18x32xf32, #tpu.memory_space<vmem>>, vector<2x16x32xf32>,
    %c0_9 = arith.constant 0 : index
    %c0_10 = arith.constant 0 : index
    %c0_11 = arith.constant 0 : index
    %6 = vector.load %arg8[%c0_9, %c0_10, %c0_11] : memref<2x18x32xf32, #tpu.memory_space<vmem>>, vector<2x16x32xf32>
    %c0_12 = arith.constant 0 : index
    %c1_13 = arith.constant 1 : index
    %c0_14 = arith.constant 0 : index
    %7 = vector.load %arg8[%c0_12, %c1_13, %c0_14] : memref<2x18x32xf32, #tpu.memory_space<vmem>>, vector<2x16x32xf32>
    %c0_15 = arith.constant 0 : index
    %c2 = arith.constant 2 : index
    %c0_16 = arith.constant 0 : index
    %8 = vector.load %arg8[%c0_15, %c2, %c0_16] : memref<2x18x32xf32, #tpu.memory_space<vmem>>, vector<2x16x32xf32>
    %9 = tpu.concatenate %6, %7, %8 in 2 : vector<2x16x32xf32>, vector<2x16x32xf32>, vector<2x16x32xf32> -> vector<2x16x96xf32>
    %10 = arith.truncf %9 : vector<2x16x96xf32> to vector<2x16x96xbf16>
    %11 = vector.shape_cast %10 : vector<2x16x96xbf16> to vector<32x96xbf16>
    %c0_17 = arith.constant 0 : index
    %c0_18 = arith.constant 0 : index
    %12 = vector.load %arg3[%c0_17, %c0_18] : memref<96x64xbf16, #tpu.memory_space<vmem>>, vector<96x64xbf16>
    %cst_19 = arith.constant dense<0.000000e+00> : vector<32x64xf32>
    %13 = tpu.matmul %11, %12, %cst_19 {dimension_numbers = #tpu.dot_dimension_numbers<[1], [0], [0], [1], [0, 0, 1, 1], [], []>} : vector<32x96xbf16>, vector<96x64xbf16>, vector<32x64xf32> -> vector<32x64xf32>
    %c0_20 = arith.constant 0 : index
    %c0_21 = arith.constant 0 : index
    %14 = vector.load %arg4[%c0_20, %c0_21] : memref<1x64xf32, #tpu.memory_space<vmem>>, vector<1x64xf32>
    %15 = vector.broadcast %14 : vector<1x64xf32> to vector<32x64xf32>
    %16 = arith.addf %13, %15 : vector<32x64xf32>
    %17 = vector.shape_cast %16 : vector<32x64xf32> to vector<2x16x64xf32>
    %18 = vector.extract_strided_slice %17 {offsets = [0, 0, 0], sizes = [2, 16, 32], strides = [1, 1, 1]} : vector<2x16x64xf32> to vector<2x16x32xf32>
    %19 = vector.extract_strided_slice %17 {offsets = [0, 0, 32], sizes = [2, 16, 32], strides = [1, 1, 1]} : vector<2x16x64xf32> to vector<2x16x32xf32>
    %20 = arith.negf %19 : vector<2x16x32xf32>
    %21 = math.exp %20 : vector<2x16x32xf32>
    %cst_22 = arith.constant 1.000000e+00 : f32
    %22 = vector.broadcast %cst_22 : f32 to vector<2x16x32xf32>
    %23 = arith.addf %22, %21 : vector<2x16x32xf32>
    %24 = arith.divf %22, %23 : vector<2x16x32xf32>
    %25 = arith.mulf %18, %24 : vector<2x16x32xf32>
    %26 = tpu.iota {dimensions = array<i32: 1>} : vector<1x16x32xi32>
    %c2_i32 = arith.constant 2 : i32
    %27 = arith.muli %arg0, %c2_i32 : i32
    %c0_i32 = arith.constant 0 : i32
    %28 = arith.addi %27, %c0_i32 : i32
    %29 = arith.index_cast %28 : i32 to index
    %30 = memref.load %arg1[%29] : memref<2xi32, #tpu.memory_space<smem>>
    %31 = vector.broadcast %30 : i32 to vector<1x16x32xi32>
    %32 = arith.cmpi slt, %26, %31 : vector<1x16x32xi32>
    %33 = arith.extui %32 : vector<1x16x32xi1> to vector<1x16x32xi32>
    %34 = arith.sitofp %33 : vector<1x16x32xi32> to vector<1x16x32xf32>
    %c2_i32_23 = arith.constant 2 : i32
    %35 = arith.muli %arg0, %c2_i32_23 : i32
    %c1_i32 = arith.constant 1 : i32
    %36 = arith.addi %35, %c1_i32 : i32
    %37 = arith.index_cast %36 : i32 to index
    %38 = memref.load %arg1[%37] : memref<2xi32, #tpu.memory_space<smem>>
    %39 = vector.broadcast %38 : i32 to vector<1x16x32xi32>
    %40 = arith.cmpi slt, %26, %39 : vector<1x16x32xi32>
    %41 = arith.extui %40 : vector<1x16x32xi1> to vector<1x16x32xi32>
    %42 = arith.sitofp %41 : vector<1x16x32xi32> to vector<1x16x32xf32>
    %43 = tpu.concatenate %34, %42 in 0 : vector<1x16x32xf32>, vector<1x16x32xf32> -> vector<2x16x32xf32>
    %44 = arith.mulf %25, %43 : vector<2x16x32xf32>
    %c0_24 = arith.constant 0 : index
    %c0_25 = arith.constant 0 : index
    %c0_26 = arith.constant 0 : index
    %45 = vector.load %arg2[%c0_24, %c0_25, %c0_26] : memref<2x16x32xbf16, #tpu.memory_space<vmem>>, vector<2x16x32xbf16>
    %46 = arith.extf %45 : vector<2x16x32xbf16> to vector<2x16x32xf32>
    %47 = arith.addf %44, %46 : vector<2x16x32xf32>
    %cst_27 = arith.constant dense<0.000000e+00> : vector<2x16xf32>
    %48 = vector.multi_reduction <add>, %47, %cst_27 [2] : vector<2x16x32xf32> to vector<2x16xf32>
    %49 = vector.shape_cast %48 : vector<2x16xf32> to vector<2x16x1xf32>
    %cst_28 = arith.constant 3.200000e+01 : f32
    %50 = vector.broadcast %cst_28 : f32 to vector<2x16x1xf32>
    %51 = arith.divf %49, %50 : vector<2x16x1xf32>
    %52 = vector.broadcast %51 : vector<2x16x1xf32> to vector<2x16x32xf32>
    %53 = arith.subf %47, %52 : vector<2x16x32xf32>
    %54 = arith.mulf %53, %53 : vector<2x16x32xf32>
    %cst_29 = arith.constant dense<0.000000e+00> : vector<2x16xf32>
    %55 = vector.multi_reduction <add>, %54, %cst_29 [2] : vector<2x16x32xf32> to vector<2x16xf32>
    %56 = vector.shape_cast %55 : vector<2x16xf32> to vector<2x16x1xf32>
    %cst_30 = arith.constant 3.200000e+01 : f32
    %57 = vector.broadcast %cst_30 : f32 to vector<2x16x1xf32>
    %58 = arith.divf %56, %57 : vector<2x16x1xf32>
    %59 = vector.broadcast %51 : vector<2x16x1xf32> to vector<2x16x32xf32>
    %60 = arith.subf %47, %59 : vector<2x16x32xf32>
    %cst_31 = arith.constant 9.99999974E-6 : f32
    %61 = vector.broadcast %cst_31 : f32 to vector<2x16x1xf32>
    %62 = arith.addf %58, %61 : vector<2x16x1xf32>
    %63 = math.rsqrt %62 : vector<2x16x1xf32>
    %64 = vector.broadcast %63 : vector<2x16x1xf32> to vector<2x16x32xf32>
    %65 = arith.mulf %60, %64 : vector<2x16x32xf32>
    %c0_32 = arith.constant 0 : index
    %c0_33 = arith.constant 0 : index
    %66 = vector.load %arg5[%c0_32, %c0_33] : memref<1x32xf32, #tpu.memory_space<vmem>>, vector<1x32xf32>
    %67 = vector.shape_cast %66 : vector<1x32xf32> to vector<1x1x32xf32>
    %c0_34 = arith.constant 0 : index
    %c0_35 = arith.constant 0 : index
    %68 = vector.load %arg6[%c0_34, %c0_35] : memref<1x32xf32, #tpu.memory_space<vmem>>, vector<1x32xf32>
    %69 = vector.shape_cast %68 : vector<1x32xf32> to vector<1x1x32xf32>
    %70 = vector.broadcast %67 : vector<1x1x32xf32> to vector<2x16x32xf32>
    %71 = arith.mulf %65, %70 : vector<2x16x32xf32>
    %72 = vector.broadcast %69 : vector<1x1x32xf32> to vector<2x16x32xf32>
    %73 = arith.addf %71, %72 : vector<2x16x32xf32>
    %c0_36 = arith.constant 0 : index
    %c0_37 = arith.constant 0 : index
    %c0_38 = arith.constant 0 : index
    %74 = vector.load %arg7[%c0_36, %c0_37, %c0_38] : memref<2x16x32xf32, #tpu.memory_space<vmem>>, vector<2x16x32xf32>
    tpu.vector_store %arg7[%c0_36, %c0_37, %c0_38], %73 {strides = array<i32>} : memref<2x16x32xf32, #tpu.memory_space<vmem>>, vector<2x16x32xf32>,
    return
  }
  func.func @transform_0(%arg0: i32, %arg1: memref<2xi32, #tpu.memory_space<smem>>) -> (i32, i32, i32) {
    %c0_i32 = arith.constant 0 : i32
    %c0_i32_0 = arith.constant 0 : i32
    %c0_i32_1 = arith.constant 0 : i32
    return %arg0, %c0_i32, %c0_i32_0 : i32, i32, i32
  }
  func.func @transform_1(%arg0: i32, %arg1: memref<2xi32, #tpu.memory_space<smem>>) -> (i32, i32) {
    %c0_i32 = arith.constant 0 : i32
    %c0_i32_0 = arith.constant 0 : i32
    %c0_i32_1 = arith.constant 0 : i32
    return %c0_i32, %c0_i32_0 : i32, i32
  }
  func.func @transform_2(%arg0: i32, %arg1: memref<2xi32, #tpu.memory_space<smem>>) -> (i32, i32) {
    %c0_i32 = arith.constant 0 : i32
    %c0_i32_0 = arith.constant 0 : i32
    %c0_i32_1 = arith.constant 0 : i32
    return %c0_i32, %c0_i32_0 : i32, i32
  }
  func.func @transform_3(%arg0: i32, %arg1: memref<2xi32, #tpu.memory_space<smem>>) -> (i32, i32) {
    %c0_i32 = arith.constant 0 : i32
    %c0_i32_0 = arith.constant 0 : i32
    %c0_i32_1 = arith.constant 0 : i32
    return %c0_i32, %c0_i32_0 : i32, i32
  }
  func.func @transform_4(%arg0: i32, %arg1: memref<2xi32, #tpu.memory_space<smem>>) -> (i32, i32) {
    %c0_i32 = arith.constant 0 : i32
    %c0_i32_0 = arith.constant 0 : i32
    %c0_i32_1 = arith.constant 0 : i32
    return %c0_i32, %c0_i32_0 : i32, i32
  }
  func.func @transform_5(%arg0: i32, %arg1: memref<2xi32, #tpu.memory_space<smem>>) -> (i32, i32, i32) {
    %c0_i32 = arith.constant 0 : i32
    %c0_i32_0 = arith.constant 0 : i32
    %c0_i32_1 = arith.constant 0 : i32
    return %arg0, %c0_i32, %c0_i32_0 : i32, i32, i32
  }
}

</mosaic_0001>

<llo_original>
// kernel: tpu_custom_call.1
$region0: #{tpu_custom_call.1}
  #allocation0 [shape = 'u32[]', space=smem, size = 0x4, offset = 0x4, fixed_abs, tag = 'smem constant byte address 0x4 - core index']
  #allocation1 [shape = 'u32[72,128]{1,0:T(1,128)}', space=vmem, size = 0x9000, scoped, tag = 'internal scratch']
  #allocation2 [shape = 'f32[2,18,32]{2,1,0:T(8,128)}', space=vmem, size = 0x6000, scoped, tag = 'scratch operand']
  #allocation3 [shape = 's32[1]{0}', space=sflag, size = 0x4, scoped, tag = 'scoped memory for tpu_custom_call.1']
  #allocation4 [shape = 'u8[512]{0}', space=smem, size = 0x200, scoped, tag = 'prefetched SMEM operand 0']
  %s0 = inlined_call_operand.vmem [shape: s32[2], index: 0, kind: input, shape index: {}]
  %s1 = inlined_call_operand.vmem [shape: bf16[2,16,32], index: 1, kind: input, shape index: {}]
  %s2 = inlined_call_operand.vmem [shape: bf16[96,64], index: 2, kind: input, shape index: {}]
  %s3 = inlined_call_operand.vmem [shape: f32[1,64], index: 3, kind: input, shape index: {}]
  %s4 = inlined_call_operand.vmem [shape: f32[1,32], index: 4, kind: input, shape index: {}]
  %s5 = inlined_call_operand.vmem [shape: f32[1,32], index: 5, kind: input, shape index: {}]
  %s6 = inlined_call_operand.hbm [shape: f32[2,16,32], index: 6, kind: output, shape index: {}]
  %s7 = sld [smem:[#allocation0]]
  $region30: #{tpu_custom_call.1} parent=0
    _
  %s9 = ssub.s32 1, %s7
  %s10 = scalar_select 0, %s9, %s7
  %s12 = sshll.u32 %s0, 4
  %s13 = int_to_ptr.vmem [resolvable:$true] %s12
  %15 = dma.vmem_to_smem %s13, 16, [#allocation4], [#allocation3]
  %17 = dma.done [#allocation3], 16
  %18 = sfence
  $region1: #{tpu_custom_call.1} parent=0
    #allocation5 [shape = 'u8[16384]{0}', space=vmem, size = 0x4000, scoped, tag = 'output window, operand 0, single buffered']
    #allocation6 [shape = 's32[1]{0}', space=sflag, size = 0x4, scoped, tag = 'scoped memory for tpu_custom_call.1']
    %19 = vsyncpa [#allocation6], 0
    // Predicated region
    $region2: #{tpu_custom_call.1} parent=1 // pred_check
      _
    $region3: #{tpu_custom_call.1} parent=1 // pred_check_branch
      %21 = sbr.rel (0) target = $region5
    $region4: #{tpu_custom_call.1} parent=1 // pred_region
      _
    $region5: #{tpu_custom_call.1} parent=1 // pred_fallthru
      _
    // Predicated region
    $region6: #{tpu_custom_call.1} parent=1 // pred_check
      _
    $region7: #{tpu_custom_call.1} parent=1 // pred_check_branch
      %23 = sbr.rel (0) target = $region9
    $region8: #{tpu_custom_call.1} parent=1 // pred_region
      _
    $region9: #{tpu_custom_call.1} parent=1 // pred_fallthru
      _
    // Predicated region
    $region10: #{tpu_custom_call.1} parent=1 // pred_check
      _
    $region11: #{tpu_custom_call.1} parent=1 // pred_check_branch
      %25 = sbr.rel (0) target = $region13
    $region12: #{tpu_custom_call.1} parent=1 // pred_region
      _
    $region13: #{tpu_custom_call.1} parent=1 // pred_fallthru
      _
    // Predicated region
    $region14: #{tpu_custom_call.1} parent=1 // pred_check
      _
    $region15: #{tpu_custom_call.1} parent=1 // pred_check_branch
      %27 = sbr.rel (0) target = $region17
    $region16: #{tpu_custom_call.1} parent=1 // pred_region
      _
    $region17: #{tpu_custom_call.1} parent=1 // pred_fallthru
      _
    // Predicated region
    $region18: #{tpu_custom_call.1} parent=1 // pred_check
      _
    $region19: #{tpu_custom_call.1} parent=1 // pred_check_branch
      %29 = sbr.rel (0) target = $region21
    $region20: #{tpu_custom_call.1} parent=1 // pred_region
      _
    $region21: #{tpu_custom_call.1} parent=1 // pred_fallthru
      _
    %vm31 = vcmask 253952
    %32 = vst.msk [vmem:[#allocation2] sm:$0x1] %vm31, 0.0
    %33 = vst.msk [vmem:[#allocation2 + $0x18] sm:$0x1] %vm31, 0.0
    %34 = vst.msk [vmem:[#allocation2 + $0x11] sm:$0x1] %vm31, 0.0
    %35 = vst.msk [vmem:[#allocation2 + $0x29] sm:$0x1] %vm31, 0.0
    %v36 = vld [vmem:[%s1] sm:$0xf]
    %v37 = vld [vmem:[%s1 + $0x4] sm:$0xf]
    %v38 = vld [vmem:[%s1 + $0x8] sm:$0xf]
    %v39 = vld [vmem:[%s1 + $0xc] sm:$0xf]
    %v40 = vunpack.c.l.bf16 %v36
    %v41 = vunpack.c.l.bf16 %v37
    %v42 = vunpack.c.l.bf16 %v38
    %v43 = vunpack.c.l.bf16 %v39
    %vm44 = vcmask 261120
    %45 = vst.msk [vmem:[#allocation2 + $0x1] sm:$0xff] %vm44, %v40
    %46 = vst.msk [vmem:[#allocation2 + $0x9] sm:$0xff] %vm44, %v41
    %47 = vst.msk [vmem:[#allocation2 + $0x19] sm:$0xff] %vm44, %v42
    %48 = vst.msk [vmem:[#allocation2 + $0x21] sm:$0xff] %vm44, %v43
    %v49 = vld [vmem:[#allocation2] sm:$0xff]
    %v50 = vld [vmem:[#allocation2 + $0x8] sm:$0xff]
    %v51 = vld [vmem:[#allocation2 + $0x18] sm:$0xff]
    %v52 = vld [vmem:[#allocation2 + $0x20] sm:$0xff]
    %v53 = vld [vmem:[#allocation2 + $0x1] sm:$0xff]
    %v54 = vld [vmem:[#allocation2 + $0x9] sm:$0xff]
    %v55 = vld [vmem:[#allocation2 + $0x19] sm:$0xff]
    %v56 = vld [vmem:[#allocation2 + $0x21] sm:$0xff]
    %v57 = vld [vmem:[#allocation2 + $0x2] sm:$0xff]
    %v58 = vld [vmem:[#allocation2 + $0xa] sm:$0xff]
    %v59 = vld [vmem:[#allocation2 + $0x1a] sm:$0xff]
    %v60 = vld [vmem:[#allocation2 + $0x22] sm:$0xff]
    %65 = vrot.lane.b32.xlu0 %v53, 32
    %v66 = vpop.permute.xlu0 %65
    %67 = vrot.lane.b32.xlu0 %v54, 32
    %v68 = vpop.permute.xlu0 %67
    %69 = vrot.lane.b32.xlu0 %v55, 32
    %v70 = vpop.permute.xlu0 %69
    %71 = vrot.lane.b32.xlu0 %v56, 32
    %v72 = vpop.permute.xlu0 %71
    %81 = vrot.lane.b32.xlu0 %v57, 64
    %v82 = vpop.permute.xlu0 %81
    %83 = vrot.lane.b32.xlu0 %v58, 64
    %v84 = vpop.permute.xlu0 %83
    %85 = vrot.lane.b32.xlu0 %v59, 64
    %v86 = vpop.permute.xlu0 %85
    %87 = vrot.lane.b32.xlu0 %v60, 64
    %v88 = vpop.permute.xlu0 %87
    %v93 = vsel %vm44, %v49, %v66
    %v94 = vsel %vm44, %v50, %v68
    %v95 = vsel %vm44, %v51, %v70
    %v96 = vsel %vm44, %v52, %v72
    %vm97 = vcmask 523264
    %v98 = vsel %vm97, %v93, %v82
    %v99 = vsel %vm97, %v94, %v84
    %v100 = vsel %vm97, %v95, %v86
    %v101 = vsel %vm97, %v96, %v88
    %v102 = vpack.c.bf16 %v98, %v98
    %v103 = vpack.c.bf16 %v99, %v99
    %v104 = vpack.c.bf16 %v100, %v100
    %v105 = vpack.c.bf16 %v101, %v101
    %v106 = vld [vmem:[%s2] sm:$0xf]
    %v107 = vld [vmem:[%s2 + $0x4] sm:$0xf]
    %v108 = vld [vmem:[%s2 + $0x8] sm:$0xf]
    %v109 = vld [vmem:[%s2 + $0xc] sm:$0xf]
    %v110 = vld [vmem:[%s2 + $0x10] sm:$0xf]
    %v111 = vld [vmem:[%s2 + $0x14] sm:$0xf]
    %v112 = vld [vmem:[%s2 + $0x18] sm:$0xf]
    %v113 = vld [vmem:[%s2 + $0x1c] sm:$0xf]
    %v114 = vld [vmem:[%s2 + $0x20] sm:$0xf]
    %v115 = vld [vmem:[%s2 + $0x24] sm:$0xf]
    %v116 = vld [vmem:[%s2 + $0x28] sm:$0xf]
    %v117 = vld [vmem:[%s2 + $0x2c] sm:$0xf]
    %v118 = vld [vmem:[%s3] sm:$0x1]
    %v120 = vperm.slane %v118, 0
    %v126 = vunpack.c.l.b16 %v102
    %v127 = vunpack.c.l.b16 %v103
    %v128 = vunpack.c.l.b16 %v104
    %v129 = vunpack.c.l.b16 %v105
    %v130 = vpack.c.b16 %v127, %v126
    %v131 = vpack.c.b16 %v129, %v128
    %v144 = vunpack.c.l.b16 %v106
    %v145 = vunpack.c.l.b16 %v107
    %v146 = vunpack.c.l.b16 %v108
    %v147 = vunpack.c.l.b16 %v109
    %v148 = vunpack.c.l.b16 %v110
    %v149 = vunpack.c.l.b16 %v111
    %v150 = vunpack.c.l.b16 %v112
    %v151 = vunpack.c.l.b16 %v113
    %v152 = vunpack.c.l.b16 %v114
    %v153 = vunpack.c.l.b16 %v115
    %v154 = vunpack.c.l.b16 %v116
    %v155 = vunpack.c.l.b16 %v117
    %v156 = vpack.c.b16 %v145, %v144
    %v157 = vpack.c.b16 %v147, %v146
    %v158 = vpack.c.b16 %v149, %v148
    %v159 = vpack.c.b16 %v151, %v150
    %v160 = vpack.c.b16 %v153, %v152
    %v161 = vpack.c.b16 %v155, %v154
    %vm168 = vcmask 785408
    %v170 = vsel %vm168, %v130, 0
    %v173 = vsel %vm168, %v131, 0
    %175 = vmatpush.bf16.msra.mxu0 0
    %176 = vmatpush.bf16.msra.mxu0 0
    %177 = vmatpush.bf16.msra.mxu0 %v161
    %178 = vmatpush.bf16.msra.mxu0 %v160
    %179 = vmatpush.bf16.msra.mxu0 %v159
    %180 = vmatpush.bf16.msra.mxu0 %v158
    %181 = vmatpush.bf16.msra.mxu0 %v157
    %182 = vmatpush.bf16.msra.mxu0 %v156
    %183 = vmatmul.bf16.gmra.mxu0 %v170
    %v184 = vpop.f32.mrf.mxu0
    %v185 = vadd.f32 %v120, %v184
    %v186 = vpop.f32.mrf.mxu0
    %v187 = vadd.f32 %v120, %v186
    %188 = vmatmul.bf16.gmra.mxu0 %v173
    %v189 = vpop.f32.mrf.mxu0
    %v190 = vadd.f32 %v120, %v189
    %v191 = vpop.f32.mrf.mxu0
    %v192 = vadd.f32 %v120, %v191
    %193 = vdwg.mxu0
    %v194 = vxor.u32 %v185, 2147483648
    %v195 = vxor.u32 %v187, 2147483648
    %v196 = vxor.u32 %v190, 2147483648
    %v197 = vxor.u32 %v192, 2147483648
    %v198 = vmul.f32 %v194, 1.442695
    %v199 = vpow.pop %v198
    %v200 = vmul.f32 %v195, 1.442695
    %v201 = vpow.pop %v200
    %v202 = vmul.f32 %v196, 1.442695
    %v203 = vpow.pop %v202
    %v204 = vmul.f32 %v197, 1.442695
    %v205 = vpow.pop %v204
    %v206 = vadd.f32 %v199, 1.0
    %v207 = vadd.f32 %v201, 1.0
    %v208 = vadd.f32 %v203, 1.0
    %v209 = vadd.f32 %v205, 1.0
    %v210 = vrcp.pop %v206
    %v211 = vmul.f32 %v206, %v210
    %v212 = vsub.f32 1.0, %v211
    %v213 = vmul.f32 %v210, %v212
    %v214 = vadd.f32 %v210, %v213
    %vm215 = vweird.f32 %v206
    %vm216 = vweird.f32 %v210
    %vm217 = vmor %vm215, %vm216
    %v218 = vsel %vm217, %v210, %v214
    %v219 = vand.u32 2147483647, %v206
    %vm220 = vcmp.eq.f32.partialorder %v219, 8.507059e+37
    %v221 = vand.u32 %v206, 2147483648
    %v222 = vor.u32 1.1754944e-38, %v221
    %v223 = vsel %vm220, %v222, %v218
    %v224 = vmul.f32 1.0, %v223
    %v225 = vrcp.pop %v207
    %v226 = vmul.f32 %v207, %v225
    %v227 = vsub.f32 1.0, %v226
    %v228 = vmul.f32 %v225, %v227
    %v229 = vadd.f32 %v225, %v228
    %vm230 = vweird.f32 %v207
    %vm231 = vweird.f32 %v225
    %vm232 = vmor %vm230, %vm231
    %v233 = vsel %vm232, %v225, %v229
    %v234 = vand.u32 2147483647, %v207
    %vm235 = vcmp.eq.f32.partialorder %v234, 8.507059e+37
    %v236 = vand.u32 %v207, 2147483648
    %v237 = vor.u32 1.1754944e-38, %v236
    %v238 = vsel %vm235, %v237, %v233
    %v239 = vmul.f32 1.0, %v238
    %v240 = vrcp.pop %v208
    %v241 = vmul.f32 %v208, %v240
    %v242 = vsub.f32 1.0, %v241
    %v243 = vmul.f32 %v240, %v242
    %v244 = vadd.f32 %v240, %v243
    %vm245 = vweird.f32 %v208
    %vm246 = vweird.f32 %v240
    %vm247 = vmor %vm245, %vm246
    %v248 = vsel %vm247, %v240, %v244
    %v249 = vand.u32 2147483647, %v208
    %vm250 = vcmp.eq.f32.partialorder %v249, 8.507059e+37
    %v251 = vand.u32 %v208, 2147483648
    %v252 = vor.u32 1.1754944e-38, %v251
    %v253 = vsel %vm250, %v252, %v248
    %v254 = vmul.f32 1.0, %v253
    %v255 = vrcp.pop %v209
    %v256 = vmul.f32 %v209, %v255
    %v257 = vsub.f32 1.0, %v256
    %v258 = vmul.f32 %v255, %v257
    %v259 = vadd.f32 %v255, %v258
    %vm260 = vweird.f32 %v209
    %vm261 = vweird.f32 %v255
    %vm262 = vmor %vm260, %vm261
    %v263 = vsel %vm262, %v255, %v259
    %v264 = vand.u32 2147483647, %v209
    %vm265 = vcmp.eq.f32.partialorder %v264, 8.507059e+37
    %v266 = vand.u32 %v209, 2147483648
    %v267 = vor.u32 1.1754944e-38, %v266
    %v268 = vsel %vm265, %v267, %v263
    %v269 = vmul.f32 1.0, %v268
    %274 = vrot.lane.b32.xlu0 %v224, 96
    %v275 = vpop.permute.xlu0 %274
    %276 = vrot.lane.b32.xlu0 %v239, 96
    %v277 = vpop.permute.xlu0 %276
    %278 = vrot.lane.b32.xlu0 %v254, 96
    %v279 = vpop.permute.xlu0 %278
    %280 = vrot.lane.b32.xlu0 %v269, 96
    %v281 = vpop.permute.xlu0 %280
    %v286 = vmul.f32 %v185, %v275
    %v287 = vmul.f32 %v187, %v277
    %v288 = vmul.f32 %v190, %v279
    %v289 = vmul.f32 %v192, %v281
    %v290 = vlaneseq
    %v291 = vshrl.u32 %v290, 7
    %v292 = vadd.s32 %v291, 8
    %s293 = smul.u32 0, 2
    %s294 = sld [smem:[#allocation4 + %s293]]
    %v295 = vstv %s294
    %vm296 = vcmp.lt.s32.totalorder %v291, %v295
    %vm297 = vcmp.lt.s32.totalorder %v292, %v295
    %v298 = vsel %vm296, 1, 0
    %v299 = vsel %vm297, 1, 0
    %v300 = vcvt.s32.f32 %v298
    %v301 = vcvt.s32.f32 %v299
    %s302 = sadd.s32 %s293, 1
    %s303 = sld [smem:[#allocation4 + %s302]]
    %v304 = vstv %s303
    %vm305 = vcmp.lt.s32.totalorder %v291, %v304
    %vm306 = vcmp.lt.s32.totalorder %v292, %v304
    %v307 = vsel %vm305, 1, 0
    %v308 = vsel %vm306, 1, 0
    %v309 = vcvt.s32.f32 %v307
    %v310 = vcvt.s32.f32 %v308
    %v311 = vmul.f32 %v286, %v300
    %v312 = vmul.f32 %v287, %v301
    %v313 = vmul.f32 %v288, %v309
    %v314 = vmul.f32 %v289, %v310
    %v315 = vld [vmem:[%s1] sm:$0xf]
    %v316 = vld [vmem:[%s1 + $0x4] sm:$0xf]
    %v317 = vld [vmem:[%s1 + $0x8] sm:$0xf]
    %v318 = vld [vmem:[%s1 + $0xc] sm:$0xf]
    %v319 = vunpack.c.l.bf16 %v315
    %v320 = vunpack.c.l.bf16 %v316
    %v321 = vunpack.c.l.bf16 %v317
    %v322 = vunpack.c.l.bf16 %v318
    %v323 = vadd.f32 %v311, %v319
    %v324 = vadd.f32 %v312, %v320
    %v325 = vadd.f32 %v313, %v321
    %v326 = vadd.f32 %v314, %v322
    %v327 = vsel %vm44, %v323, 0.0
    %328 = vadd.xlane.f32.xlu0 %v327
    %v329 = vpop.xlane.xlu0 %328
    %v330 = vsel %vm44, %v324, 0.0
    %331 = vadd.xlane.f32.xlu0 %v330
    %v332 = vpop.xlane.xlu0 %331
    %v333 = vsel %vm44, %v325, 0.0
    %334 = vadd.xlane.f32.xlu0 %v333
    %v335 = vpop.xlane.xlu0 %334
    %v336 = vsel %vm44, %v326, 0.0
    %337 = vadd.xlane.f32.xlu0 %v336
    %v338 = vpop.xlane.xlu0 %337
    %v339 = vrcp.pop 32.0
    %v340 = vmul.f32 32.0, %v339
    %v341 = vsub.f32 1.0, %v340
    %v342 = vmul.f32 %v339, %v341
    %v343 = vadd.f32 %v339, %v342
    %vm344 = vweird.f32 %v339
    %v345 = vsel %vm344, %v339, %v343
    %v346 = vmul.f32 %v329, %v345
    %v347 = vmul.f32 %v332, %v345
    %v348 = vmul.f32 %v335, %v345
    %v349 = vmul.f32 %v338, %v345
    %v350 = vsub.f32 %v323, %v346
    %v351 = vsub.f32 %v324, %v347
    %v352 = vsub.f32 %v325, %v348
    %v353 = vsub.f32 %v326, %v349
    %v354 = vmul.f32 %v350, %v350
    %v355 = vmul.f32 %v351, %v351
    %v356 = vmul.f32 %v352, %v352
    %v357 = vmul.f32 %v353, %v353
    %v358 = vsel %vm44, %v354, 0.0
    %359 = vadd.xlane.f32.xlu0 %v358
    %v360 = vpop.xlane.xlu0 %359
    %v361 = vsel %vm44, %v355, 0.0
    %362 = vadd.xlane.f32.xlu0 %v361
    %v363 = vpop.xlane.xlu0 %362
    %v364 = vsel %vm44, %v356, 0.0
    %365 = vadd.xlane.f32.xlu0 %v364
    %v366 = vpop.xlane.xlu0 %365
    %v367 = vsel %vm44, %v357, 0.0
    %368 = vadd.xlane.f32.xlu0 %v367
    %v369 = vpop.xlane.xlu0 %368
    %v370 = vmul.f32 %v360, %v345
    %v371 = vmul.f32 %v363, %v345
    %v372 = vmul.f32 %v366, %v345
    %v373 = vmul.f32 %v369, %v345
    %v374 = vadd.f32 %v370, 1e-05
    %v375 = vadd.f32 %v371, 1e-05
    %v376 = vadd.f32 %v372, 1e-05
    %v377 = vadd.f32 %v373, 1e-05
    %v378 = vrsqrt.pop %v374
    %v379 = vmul.f32 %v378, %v374
    %v380 = vmul.f32 %v379, %v378
    %v381 = vmul.f32 0.5, %v380
    %v382 = vsub.f32 1.5, %v381
    %v383 = vmul.f32 %v378, %v382
    %vm384 = vweird.f32 %v374
    %vm385 = vweird.f32 %v378
    %vm386 = vmor %vm384, %vm385
    %v387 = vsel %vm386, %v378, %v383
    %v388 = vrsqrt.pop %v375
    %v389 = vmul.f32 %v388, %v375
    %v390 = vmul.f32 %v389, %v388
    %v391 = vmul.f32 0.5, %v390
    %v392 = vsub.f32 1.5, %v391
    %v393 = vmul.f32 %v388, %v392
    %vm394 = vweird.f32 %v375
    %vm395 = vweird.f32 %v388
    %vm396 = vmor %vm394, %vm395
    %v397 = vsel %vm396, %v388, %v393
    %v398 = vrsqrt.pop %v376
    %v399 = vmul.f32 %v398, %v376
    %v400 = vmul.f32 %v399, %v398
    %v401 = vmul.f32 0.5, %v400
    %v402 = vsub.f32 1.5, %v401
    %v403 = vmul.f32 %v398, %v402
    %vm404 = vweird.f32 %v376
    %vm405 = vweird.f32 %v398
    %vm406 = vmor %vm404, %vm405
    %v407 = vsel %vm406, %v398, %v403
    %v408 = vrsqrt.pop %v377
    %v409 = vmul.f32 %v408, %v377
    %v410 = vmul.f32 %v409, %v408
    %v411 = vmul.f32 0.5, %v410
    %v412 = vsub.f32 1.5, %v411
    %v413 = vmul.f32 %v408, %v412
    %vm414 = vweird.f32 %v377
    %vm415 = vweird.f32 %v408
    %vm416 = vmor %vm414, %vm415
    %v417 = vsel %vm416, %v408, %v413
    %v418 = vmul.f32 %v350, %v387
    %v419 = vmul.f32 %v351, %v397
    %v420 = vmul.f32 %v352, %v407
    %v421 = vmul.f32 %v353, %v417
    %v422 = vld [vmem:[%s4] sm:$0x1]
    %v423 = vld [vmem:[%s5] sm:$0x1]
    %v425 = vperm.slane %v422, 0
    %v427 = vmul.f32 %v418, %v425
    %v428 = vmul.f32 %v419, %v425
    %v429 = vmul.f32 %v420, %v425
    %v430 = vmul.f32 %v421, %v425
    %v432 = vperm.slane %v423, 0
    %v434 = vadd.f32 %v427, %v432
    %v435 = vadd.f32 %v428, %v432
    %v436 = vadd.f32 %v429, %v432
    %v437 = vadd.f32 %v430, %v432
    %438 = vst.msk [vmem:[#allocation5] sm:$0xff] %vm44, %v434
    %439 = vst.msk [vmem:[#allocation5 + $0x8] sm:$0xff] %vm44, %v435
    %440 = vst.msk [vmem:[#allocation5 + $0x10] sm:$0xff] %vm44, %v436
    %441 = vst.msk [vmem:[#allocation5 + $0x18] sm:$0xff] %vm44, %v437
    // Predicated region
    $region22: #{tpu_custom_call.1} parent=1 // pred_check
      _
    $region23: #{tpu_custom_call.1} parent=1 // pred_check_branch
      %443 = sbr.rel (0) target = $region25
    $region24: #{tpu_custom_call.1} parent=1 // pred_region
      %445 = vsyncadd [#allocation6], 0
      %s446 = sshll.u32 [#allocation5], 4
      %s447 = int_to_ptr.vmem [resolvable:$true] %s446
      %s448 = sshll.u32 %s6, 4
      %s449 = int_to_ptr.hbm [resolvable:$true] %s448
      %454 = dma.vmem_to_hbm [thread:$0]  %s447, 512, %s449, [#allocation6], 128, 128, 8
    $region25: #{tpu_custom_call.1} parent=1 // pred_fallthru
      _
    // Predicated region
    $region26: #{tpu_custom_call.1} parent=1 // pred_check
      _
    $region27: #{tpu_custom_call.1} parent=1 // pred_check_branch
      %456 = sbr.rel (0) target = $region29
    $region28: #{tpu_custom_call.1} parent=1 // pred_region
      %458 = dma.done [#allocation6], 512
    $region29: #{tpu_custom_call.1} parent=1 // pred_fallthru
      _
    %459 = vsyncpa [#allocation6], 1

</llo_original>
